<compile_context>
chip_gen: v7x
topology: tpu7x:2x2x1
jax: 0.10.0
libtpu: 0.0.40
codegen_flags: <defaults>
</compile_context>

<pallas_src>
import functools

import jax
import jax.numpy as jnp
from jax.experimental import pallas as pl
from jax.experimental.pallas import tpu as pltpu


def _mlp_kernel(x_ref, w1_ref, b1_ref, w2_ref, b2_ref, o_ref, *, compute_dtype):
    # MXU matmuls with f32 accumulation; bias add on VPU, tanh on EUP (f32).
    x = x_ref[...].astype(compute_dtype)

    h1 = jnp.dot(x, w1_ref[...], preferred_element_type=jnp.float32)
    h1 = jnp.tanh(h1 + b1_ref[...])

    h2 = jnp.dot(h1.astype(compute_dtype), w2_ref[...],
                 preferred_element_type=jnp.float32)
    h2 = jnp.tanh(h2 + b2_ref[...])

    o_ref[...] = h2.astype(o_ref.dtype)


def _choose_tile_b(B, tile_b):
    """Pick a batch tile: one step for small B, 8-aligned >=2-step tiles otherwise."""
    if B <= tile_b:
        # Single grid step: block shape equals the full batch dim, so no
        # 8-alignment constraint and no pipeline machinery / per-step overhead.
        return B
    # Multi-step path: tile must be a multiple of 8 (sublane alignment).
    tb = max(8, (tile_b // 8) * 8)
    # Ensure the grid has >= 2 steps so v7x can shard across its 2 TensorCores
    # (a no-op for single-TC v5e/v6e).
    half = ((B + 1) // 2 + 7) // 8 * 8
    return max(8, min(tb, half))


def net_forward(x, w1, b1, w2, b2, *, tile_b=8192,
                compute_dtype=jnp.bfloat16, out_dtype=None):
    """Pallas equivalent of Net.forward (the self.mlp Sequential)."""
    B, IN = x.shape
    H = w2.shape[1]
    if out_dtype is None:
        out_dtype = x.dtype

    # Pre-cast weights outside the kernel: they are VMEM-resident (constant
    # block index), so the cast happens once and the resident buffers shrink.
    w1_c = w1.astype(compute_dtype)
    w2_c = w2.astype(compute_dtype)

    # Biases kept 2-D (1, H), f32: broadcast over the batch tile, stay resident.
    b1_2d = b1.reshape(1, H).astype(jnp.float32)
    b2_2d = b2.reshape(1, H).astype(jnp.float32)

    tile_b = _choose_tile_b(B, tile_b)
    num_tiles = pl.cdiv(B, tile_b)

    in_bytes = B * IN * jnp.dtype(x.dtype).itemsize
    out_bytes = B * H * jnp.dtype(out_dtype).itemsize
    w_bytes = (IN * H + H * H) * jnp.dtype(compute_dtype).itemsize + 2 * H * 4
    cost = pl.CostEstimate(
        flops=2 * B * (IN * H + H * H),
        transcendentals=2 * H * B,
        bytes_accessed=in_bytes + out_bytes + w_bytes,
    )

    kernel = functools.partial(_mlp_kernel, compute_dtype=compute_dtype)

    return pl.pallas_call(
        kernel,
        out_shape=jax.ShapeDtypeStruct((B, H), out_dtype),
        grid_spec=pltpu.PrefetchScalarGridSpec(
            num_scalar_prefetch=0,
            grid=(num_tiles,),
            in_specs=[
                # Batch-tiled input, double-buffered by the Pallas pipeline.
                pl.BlockSpec((tile_b, IN), lambda i: (i, 0)),
                # Weights / biases: constant block index -> resident in VMEM.
                pl.BlockSpec((IN, H), lambda i: (0, 0)),
                pl.BlockSpec((1, H), lambda i: (0, 0)),
                pl.BlockSpec((H, H), lambda i: (0, 0)),
                pl.BlockSpec((1, H), lambda i: (0, 0)),
            ],
            # Full 128-wide, lane-dense output block (unmasked stores).
            out_specs=pl.BlockSpec((tile_b, H), lambda i: (i, 0)),
        ),
        compiler_params=pltpu.CompilerParams(
            dimension_semantics=("parallel",),
        ),
        cost_estimate=cost,
    )(x, w1_c, b1_2d, w2_c, b2_2d)


def init_params(key, in_dim=13, hidden=128):
    """Deterministic synthetic parameters (shapes from Net.__init__)."""
    k1, k2, k3, k4 = jax.random.split(key, 4)
    w1 = jax.random.uniform(k1, (in_dim, hidden), jnp.float32, -1.0, 1.0) / jnp.sqrt(in_dim)
    b1 = jax.random.uniform(k2, (hidden,), jnp.float32, -1.0, 1.0) / jnp.sqrt(in_dim)
    w2 = jax.random.uniform(k3, (hidden, hidden), jnp.float32, -1.0, 1.0) / jnp.sqrt(hidden)
    b2 = jax.random.uniform(k4, (hidden,), jnp.float32, -1.0, 1.0) / jnp.sqrt(hidden)
    return w1, b1, w2, b2


if __name__ == "__main__":
    key = jax.random.PRNGKey(0)
    kx, kp = jax.random.split(key)

    # Small shapes consistent with Net.forward: (batch, 13) -> (batch, 128).
    # batch=32 collapses to a single grid step (no pipeline overhead).
    B, IN = 32, 13
    x = jax.random.normal(kx, (B, IN), dtype=jnp.float32)
    w1, b1, w2, b2 = init_params(kp)

    # Default path: bf16 MXU operands, f32 accumulation, f32 output.
    out = net_forward(x, w1, b1, w2, b2)
    out = jax.block_until_ready(out)

    # Reference check against plain JAX (f32). bf16 operand precision ->
    # loosened tolerance; outputs are tanh-bounded in [-1, 1].
    ref = jnp.tanh(jnp.tanh(x @ w1 + b1) @ w2 + b2)
    assert out.shape == (B, 128)
    assert jnp.allclose(out, ref, atol=3e-2, rtol=3e-2), (
        float(jnp.max(jnp.abs(out - ref))))

    # Strict f32 path (exact-precision check) still supported.
    out_f32 = jax.block_until_ready(
        net_forward(x, w1, b1, w2, b2, compute_dtype=jnp.float32))
    assert jnp.allclose(out_f32, ref, atol=1e-5, rtol=1e-5)

    # TODO(synk): Net.act (action_net head + masked Categorical sampling) is
    # policy glue, not part of forward(); only the MLP forward is a kernel.
    print("KERNEL_OK")
</pallas_src>

<mosaic_0001>
module attributes {stable_mosaic.version = 11 : i64} {
  func.func @_mlp_kernel(%arg0: i32, %arg1: memref<32x13xf32, #tpu.memory_space<vmem>>, %arg2: memref<13x128xbf16, #tpu.memory_space<vmem>>, %arg3: memref<1x128xf32, #tpu.memory_space<vmem>>, %arg4: memref<128x128xbf16, #tpu.memory_space<vmem>>, %arg5: memref<1x128xf32, #tpu.memory_space<vmem>>, %arg6: memref<32x128xf32, #tpu.memory_space<vmem>>) attributes {dimension_semantics = [#tpu.dimension_semantics<parallel>], iteration_bounds = array<i64: 1>, scalar_prefetch = 0 : i64, scratch_operands = 0 : i64, tpu.core_type = #tpu.core_type<tc>, window_params = [{transform_indices = @transform_0, window_bounds = array<i64: 32, 13>}, {pipeline_mode = #tpu.pipeline_mode<synchronous>, transform_indices = @transform_1, window_bounds = array<i64: 13, 128>}, {pipeline_mode = #tpu.pipeline_mode<synchronous>, transform_indices = @transform_2, window_bounds = array<i64: 1, 128>}, {pipeline_mode = #tpu.pipeline_mode<synchronous>, transform_indices = @transform_3, window_bounds = array<i64: 128, 128>}, {pipeline_mode = #tpu.pipeline_mode<synchronous>, transform_indices = @transform_4, window_bounds = array<i64: 1, 128>}, {transform_indices = @transform_5, window_bounds = array<i64: 32, 128>}]} {
    %c0 = arith.constant 0 : index
    %c0_0 = arith.constant 0 : index
    %0 = vector.load %arg1[%c0, %c0_0] : memref<32x13xf32, #tpu.memory_space<vmem>>, vector<32x13xf32>
    %1 = arith.truncf %0 : vector<32x13xf32> to vector<32x13xbf16>
    %c0_1 = arith.constant 0 : index
    %c0_2 = arith.constant 0 : index
    %2 = vector.load %arg2[%c0_1, %c0_2] : memref<13x128xbf16, #tpu.memory_space<vmem>>, vector<13x128xbf16>
    %cst = arith.constant dense<0.000000e+00> : vector<32x128xf32>
    %3 = tpu.matmul %1, %2, %cst {dimension_numbers = #tpu.dot_dimension_numbers<[1], [0], [0], [1], [0, 0, 1, 1], [], []>} : vector<32x13xbf16>, vector<13x128xbf16>, vector<32x128xf32> -> vector<32x128xf32>
    %c0_3 = arith.constant 0 : index
    %c0_4 = arith.constant 0 : index
    %4 = vector.load %arg3[%c0_3, %c0_4] : memref<1x128xf32, #tpu.memory_space<vmem>>, vector<1x128xf32>
    %5 = vector.broadcast %4 : vector<1x128xf32> to vector<32x128xf32>
    %6 = arith.addf %3, %5 : vector<32x128xf32>
    %7 = math.tanh %6 : vector<32x128xf32>
    %8 = arith.truncf %7 : vector<32x128xf32> to vector<32x128xbf16>
    %c0_5 = arith.constant 0 : index
    %c0_6 = arith.constant 0 : index
    %9 = vector.load %arg4[%c0_5, %c0_6] : memref<128x128xbf16, #tpu.memory_space<vmem>>, vector<128x128xbf16>
    %cst_7 = arith.constant dense<0.000000e+00> : vector<32x128xf32>
    %10 = tpu.matmul %8, %9, %cst_7 {dimension_numbers = #tpu.dot_dimension_numbers<[1], [0], [0], [1], [0, 0, 1, 1], [], []>} : vector<32x128xbf16>, vector<128x128xbf16>, vector<32x128xf32> -> vector<32x128xf32>
    %c0_8 = arith.constant 0 : index
    %c0_9 = arith.constant 0 : index
    %11 = vector.load %arg5[%c0_8, %c0_9] : memref<1x128xf32, #tpu.memory_space<vmem>>, vector<1x128xf32>
    %12 = vector.broadcast %11 : vector<1x128xf32> to vector<32x128xf32>
    %13 = arith.addf %10, %12 : vector<32x128xf32>
    %14 = math.tanh %13 : vector<32x128xf32>
    %c0_10 = arith.constant 0 : index
    %c0_11 = arith.constant 0 : index
    %15 = vector.load %arg6[%c0_10, %c0_11] : memref<32x128xf32, #tpu.memory_space<vmem>>, vector<32x128xf32>
    tpu.vector_store %arg6[%c0_10, %c0_11], %14 {strides = array<i32>} : memref<32x128xf32, #tpu.memory_space<vmem>>, vector<32x128xf32>,
    return
  }
  func.func @transform_0(%arg0: i32) -> (i32, i32) {
    %c0_i32 = arith.constant 0 : i32
    %c0_i32_0 = arith.constant 0 : i32
    return %arg0, %c0_i32 : i32, i32
  }
  func.func @transform_1(%arg0: i32) -> (i32, i32) {
    %c0_i32 = arith.constant 0 : i32
    %c0_i32_0 = arith.constant 0 : i32
    %c0_i32_1 = arith.constant 0 : i32
    return %c0_i32, %c0_i32_0 : i32, i32
  }
  func.func @transform_2(%arg0: i32) -> (i32, i32) {
    %c0_i32 = arith.constant 0 : i32
    %c0_i32_0 = arith.constant 0 : i32
    %c0_i32_1 = arith.constant 0 : i32
    return %c0_i32, %c0_i32_0 : i32, i32
  }
  func.func @transform_3(%arg0: i32) -> (i32, i32) {
    %c0_i32 = arith.constant 0 : i32
    %c0_i32_0 = arith.constant 0 : i32
    %c0_i32_1 = arith.constant 0 : i32
    return %c0_i32, %c0_i32_0 : i32, i32
  }
  func.func @transform_4(%arg0: i32) -> (i32, i32) {
    %c0_i32 = arith.constant 0 : i32
    %c0_i32_0 = arith.constant 0 : i32
    %c0_i32_1 = arith.constant 0 : i32
    return %c0_i32, %c0_i32_0 : i32, i32
  }
  func.func @transform_5(%arg0: i32) -> (i32, i32) {
    %c0_i32 = arith.constant 0 : i32
    %c0_i32_0 = arith.constant 0 : i32
    return %arg0, %c0_i32 : i32, i32
  }
}

</mosaic_0001>

<llo_original>
// kernel: tpu_custom_call.1
$region0: #{tpu_custom_call.1}
  #allocation0 [shape = 'u32[]', space=smem, size = 0x4, offset = 0x4, fixed_abs, tag = 'smem constant byte address 0x4 - core index']
  #allocation1 [shape = 'u32[144,128]{1,0:T(1,128)}', space=vmem, size = 0x12000, scoped, tag = 'internal scratch']
  %s0 = inlined_call_operand.vmem [shape: f32[32,13], index: 0, kind: input, shape index: {}]
  %s1 = inlined_call_operand.vmem [shape: bf16[13,128], index: 1, kind: input, shape index: {}]
  %s2 = inlined_call_operand.vmem [shape: f32[1,128], index: 2, kind: input, shape index: {}]
  %s3 = inlined_call_operand.hbm [shape: bf16[128,128], index: 3, kind: input, shape index: {}]
  %s4 = inlined_call_operand.vmem [shape: f32[1,128], index: 4, kind: input, shape index: {}]
  %s5 = inlined_call_operand.hbm [shape: f32[32,128], index: 5, kind: output, shape index: {}]
  %s6 = sld [smem:[#allocation0]]
  $region34: #{tpu_custom_call.1} parent=0
    _
  %s8 = ssub.s32 1, %s6
  %s9 = scalar_select 0, %s8, %s6
  $region1: #{tpu_custom_call.1} parent=0
    #allocation2 [shape = 'u8[32768]{0}', space=vmem, size = 0x8000, scoped, tag = 'input window, operand 3, single buffered']
    #allocation3 [shape = 's32[1]{0}', space=sflag, size = 0x4, scoped, tag = 'scoped memory for tpu_custom_call.1']
    #allocation4 [shape = 's32[1]{0}', space=sflag, size = 0x4, scoped, tag = 'scoped memory for tpu_custom_call.1']
    #allocation5 [shape = 'u8[16384]{0}', space=vmem, size = 0x4000, scoped, tag = 'output window, operand 0, single buffered']
    %10 = vsyncpa [#allocation3], 0
    %11 = vsyncpa [#allocation4], 0
    // Predicated region
    $region2: #{tpu_custom_call.1} parent=1 // pred_check
      _
    $region3: #{tpu_custom_call.1} parent=1 // pred_check_branch
      %13 = sbr.rel (0) target = $region5
    $region4: #{tpu_custom_call.1} parent=1 // pred_region
      _
    $region5: #{tpu_custom_call.1} parent=1 // pred_fallthru
      _
    // Predicated region
    $region6: #{tpu_custom_call.1} parent=1 // pred_check
      _
    $region7: #{tpu_custom_call.1} parent=1 // pred_check_branch
      %15 = sbr.rel (0) target = $region9
    $region8: #{tpu_custom_call.1} parent=1 // pred_region
      _
    $region9: #{tpu_custom_call.1} parent=1 // pred_fallthru
      _
    // Predicated region
    $region10: #{tpu_custom_call.1} parent=1 // pred_check
      _
    $region11: #{tpu_custom_call.1} parent=1 // pred_check_branch
      %17 = sbr.rel (0) target = $region13
    $region12: #{tpu_custom_call.1} parent=1 // pred_region
      _
    $region13: #{tpu_custom_call.1} parent=1 // pred_fallthru
      _
    // Predicated region
    $region14: #{tpu_custom_call.1} parent=1 // pred_check
      _
    $region15: #{tpu_custom_call.1} parent=1 // pred_check_branch
      %19 = sbr.rel (0) target = $region17
    $region16: #{tpu_custom_call.1} parent=1 // pred_region
      %s21 = ssub.s32 1024, 1024
      %22 = vsyncadd [#allocation3], %s21
      %s23 = sshll.u32 [#allocation2], 4
      %s24 = int_to_ptr.vmem [resolvable:$true] %s23
      %29 = dma.hbm_to_vmem [thread:$0]  %s3, 1024, %s24, [#allocation3], 64, 64, 4
    $region17: #{tpu_custom_call.1} parent=1 // pred_fallthru
      _
    // Predicated region
    $region18: #{tpu_custom_call.1} parent=1 // pred_check
      _
    $region19: #{tpu_custom_call.1} parent=1 // pred_check_branch
      %31 = sbr.rel (0) target = $region21
    $region20: #{tpu_custom_call.1} parent=1 // pred_region
      _
    $region21: #{tpu_custom_call.1} parent=1 // pred_fallthru
      _
    // Predicated region
    $region22: #{tpu_custom_call.1} parent=1 // pred_check
      _
    $region23: #{tpu_custom_call.1} parent=1 // pred_check_branch
      %33 = sbr.rel (0) target = $region25
    $region24: #{tpu_custom_call.1} parent=1 // pred_region
      %34 = dma.done [#allocation3], 1024
    $region25: #{tpu_custom_call.1} parent=1 // pred_fallthru
      _
    %v36 = vld [vmem:[%s0] sm:$0xff]
    %v37 = vld [vmem:[%s0 + $0x8] sm:$0xff]
    %v38 = vld [vmem:[%s0 + $0x10] sm:$0xff]
    %v39 = vld [vmem:[%s0 + $0x18] sm:$0xff]
    %v40 = vpack.c.bf16 %v37, %v36
    %v41 = vpack.c.bf16 %v39, %v38
    %v42 = vld [vmem:[%s1] sm:$0xf]
    %v43 = vld [vmem:[%s1 + $0x4] sm:$0x7]
    %v44 = vld [vmem:[%s2] sm:$0x1]
    %v46 = vlaneseq
    %v47 = vshrl.u32 %v46, 7
    %v48 = vsub.s32 0, %v47
    %v49 = vrot.slane %v44, %v48
    %v53 = vunpack.c.l.b16 %v42
    %v54 = vunpack.c.l.b16 %v43
    %v55 = vpack.c.b16 %v54, %v53
    %vm56 = vcmask 105472
    %v58 = vsel %vm56, %v40, 0
    %v61 = vsel %vm56, %v41, 0
    %vm63 = vcmask 1045504
    %vm64 = vcmask 1046528
    %v65 = vsel %vm63, 4294967295, 65535
    %v66 = vsel %vm64, %v65, 0
    %v68 = vand.u32 %v55, %v66
    %70 = vmatprep.subr.bf16.mxu0 0
    %71 = vmatpush1.bf16.msra.mxu0 %v68
    %72 = vmatprep.subr.bf16.mxu0 0
    %73 = vmatpush1.bf16.msra.mxu0 0
    %74 = vmatprep.subr.bf16.mxu0 0
    %75 = vmatpush1.bf16.msra.mxu0 0
    %76 = vmatprep.subr.bf16.mxu0 0
    %77 = vmatpush1.bf16.msra.mxu0 0
    %78 = vmatprep.subr.bf16.mxu0 0
    %79 = vmatpush1.bf16.msra.mxu0 0
    %80 = vmatprep.subr.bf16.mxu0 0
    %81 = vmatpush1.bf16.msra.mxu0 0
    %82 = vmatprep.subr.bf16.mxu0 0
    %83 = vmatpush1.bf16.msra.mxu0 0
    %84 = vmatprep.subr.bf16.mxu0 0
    %85 = vmatpush1.bf16.msra.mxu0 0
    %86 = vmatprep.subr.bf16.mxu0 0
    %87 = vmatpush1.bf16.msra.mxu0 0
    %88 = vmatprep.subr.bf16.mxu0 0
    %89 = vmatpush1.bf16.msra.mxu0 0
    %90 = vmatprep.subr.bf16.mxu0 0
    %91 = vmatpush1.bf16.msra.mxu0 0
    %92 = vmatprep.subr.bf16.mxu0 0
    %93 = vmatpush1.bf16.msra.mxu0 0
    %94 = vmatprep.subr.bf16.mxu0 0
    %95 = vmatpush1.bf16.msra.mxu0 0
    %96 = vmatprep.subr.bf16.mxu0 0
    %97 = vmatpush1.bf16.msra.mxu0 0
    %98 = vmatprep.subr.bf16.mxu0 0
    %99 = vmatpush1.bf16.msra.mxu0 0
    %100 = vmatprep.subr.bf16.mxu0 0
    %101 = vmatpush1.bf16.msra.mxu0 0
    %102 = vmatprep.mubr.bf16.mxu0 0
    %103 = vmatmul.mubr.bf16.gmra.mrb[0].mxu0 %v58
    %v104 = vpop.f32.mrb[0].mxu0
    %v105 = vadd.f32 %v49, %v104
    %v106 = vpop.f32.mrb[0].mxu0
    %v107 = vpop.f32.mrb[0].mxu0
    %v108 = vadd.f32 %v49, %v107
    %v109 = vpop.f32.mrb[0].mxu0
    %110 = vmatprep.mubr.bf16.mxu0 0
    %111 = vmatmul.mubr.bf16.gmra.mrb[0].mxu0 %v61
    %v112 = vpop.f32.mrb[0].mxu0
    %v113 = vadd.f32 %v49, %v112
    %v114 = vpop.f32.mrb[0].mxu0
    %v115 = vpop.f32.mrb[0].mxu0
    %v116 = vadd.f32 %v49, %v115
    %v117 = vpop.f32.mrb[0].mxu0
    %118 = vdwg.mxu0
    %v119 = vtanh.pop %v105
    %v120 = vtanh.pop %v108
    %v121 = vtanh.pop %v113
    %v122 = vtanh.pop %v116
    %v123 = vpack.c.bf16 %v120, %v119
    %v124 = vpack.c.bf16 %v122, %v121
    %v125 = vld [vmem:[#allocation2] sm:$0xf]
    %v126 = vld [vmem:[#allocation2 + $0x4] sm:$0xf]
    %v127 = vld [vmem:[#allocation2 + $0x8] sm:$0xf]
    %v128 = vld [vmem:[#allocation2 + $0xc] sm:$0xf]
    %v129 = vld [vmem:[#allocation2 + $0x10] sm:$0xf]
    %v130 = vld [vmem:[#allocation2 + $0x14] sm:$0xf]
    %v131 = vld [vmem:[#allocation2 + $0x18] sm:$0xf]
    %v132 = vld [vmem:[#allocation2 + $0x1c] sm:$0xf]
    %v133 = vld [vmem:[#allocation2 + $0x20] sm:$0xf]
    %v134 = vld [vmem:[#allocation2 + $0x24] sm:$0xf]
    %v135 = vld [vmem:[#allocation2 + $0x28] sm:$0xf]
    %v136 = vld [vmem:[#allocation2 + $0x2c] sm:$0xf]
    %v137 = vld [vmem:[#allocation2 + $0x30] sm:$0xf]
    %v138 = vld [vmem:[#allocation2 + $0x34] sm:$0xf]
    %v139 = vld [vmem:[#allocation2 + $0x38] sm:$0xf]
    %v140 = vld [vmem:[#allocation2 + $0x3c] sm:$0xf]
    %v141 = vld [vmem:[%s4] sm:$0x1]
    %v143 = vlaneseq
    %v144 = vshrl.u32 %v143, 7
    %v145 = vsub.s32 0, %v144
    %v146 = vrot.slane %v141, %v145
    %v164 = vunpack.c.l.b16 %v125
    %v165 = vunpack.c.l.b16 %v126
    %v166 = vunpack.c.l.b16 %v127
    %v167 = vunpack.c.l.b16 %v128
    %v168 = vunpack.c.l.b16 %v129
    %v169 = vunpack.c.l.b16 %v130
    %v170 = vunpack.c.l.b16 %v131
    %v171 = vunpack.c.l.b16 %v132
    %v172 = vunpack.c.l.b16 %v133
    %v173 = vunpack.c.l.b16 %v134
    %v174 = vunpack.c.l.b16 %v135
    %v175 = vunpack.c.l.b16 %v136
    %v176 = vunpack.c.l.b16 %v137
    %v177 = vunpack.c.l.b16 %v138
    %v178 = vunpack.c.l.b16 %v139
    %v179 = vunpack.c.l.b16 %v140
    %v180 = vpack.c.b16 %v165, %v164
    %v181 = vpack.c.b16 %v167, %v166
    %v182 = vpack.c.b16 %v169, %v168
    %v183 = vpack.c.b16 %v171, %v170
    %v184 = vpack.c.b16 %v173, %v172
    %v185 = vpack.c.b16 %v175, %v174
    %v186 = vpack.c.b16 %v177, %v176
    %v187 = vpack.c.b16 %v179, %v178
    %196 = vmatprep.subr.bf16.mxu0 0
    %197 = vmatpush1.bf16.msra.mxu0 %v180
    %198 = vmatprep.subr.bf16.mxu0 0
    %199 = vmatpush1.bf16.msra.mxu0 %v181
    %200 = vmatprep.subr.bf16.mxu0 0
    %201 = vmatpush1.bf16.msra.mxu0 %v182
    %202 = vmatprep.subr.bf16.mxu0 0
    %203 = vmatpush1.bf16.msra.mxu0 %v183
    %204 = vmatprep.subr.bf16.mxu0 0
    %205 = vmatpush1.bf16.msra.mxu0 %v184
    %206 = vmatprep.subr.bf16.mxu0 0
    %207 = vmatpush1.bf16.msra.mxu0 %v185
    %208 = vmatprep.subr.bf16.mxu0 0
    %209 = vmatpush1.bf16.msra.mxu0 %v186
    %210 = vmatprep.subr.bf16.mxu0 0
    %211 = vmatpush1.bf16.msra.mxu0 %v187
    %212 = vmatprep.subr.bf16.mxu0 0
    %213 = vmatpush1.bf16.msra.mxu0 0
    %214 = vmatprep.subr.bf16.mxu0 0
    %215 = vmatpush1.bf16.msra.mxu0 0
    %216 = vmatprep.subr.bf16.mxu0 0
    %217 = vmatpush1.bf16.msra.mxu0 0
    %218 = vmatprep.subr.bf16.mxu0 0
    %219 = vmatpush1.bf16.msra.mxu0 0
    %220 = vmatprep.subr.bf16.mxu0 0
    %221 = vmatpush1.bf16.msra.mxu0 0
    %222 = vmatprep.subr.bf16.mxu0 0
    %223 = vmatpush1.bf16.msra.mxu0 0
    %224 = vmatprep.subr.bf16.mxu0 0
    %225 = vmatpush1.bf16.msra.mxu0 0
    %226 = vmatprep.subr.bf16.mxu0 0
    %227 = vmatpush1.bf16.msra.mxu0 0
    %228 = vmatprep.mubr.bf16.mxu0 0
    %229 = vmatmul.mubr.bf16.gmra.mrb[0].mxu0 %v123
    %v230 = vpop.f32.mrb[0].mxu0
    %v231 = vadd.f32 %v146, %v230
    %v232 = vpop.f32.mrb[0].mxu0
    %v233 = vpop.f32.mrb[0].mxu0
    %v234 = vadd.f32 %v146, %v233
    %v235 = vpop.f32.mrb[0].mxu0
    %236 = vmatprep.mubr.bf16.mxu0 0
    %237 = vmatmul.mubr.bf16.gmra.mrb[0].mxu0 %v124
    %v238 = vpop.f32.mrb[0].mxu0
    %v239 = vadd.f32 %v146, %v238
    %v240 = vpop.f32.mrb[0].mxu0
    %v241 = vpop.f32.mrb[0].mxu0
    %v242 = vadd.f32 %v146, %v241
    %v243 = vpop.f32.mrb[0].mxu0
    %244 = vdwg.mxu0
    %v245 = vtanh.pop %v231
    %v246 = vtanh.pop %v234
    %v247 = vtanh.pop %v239
    %v248 = vtanh.pop %v242
    %249 = vst [vmem:[#allocation5] sm:$0xff] %v245
    %250 = vst [vmem:[#allocation5 + $0x8] sm:$0xff] %v246
    %251 = vst [vmem:[#allocation5 + $0x10] sm:$0xff] %v247
    %252 = vst [vmem:[#allocation5 + $0x18] sm:$0xff] %v248
    // Predicated region
    $region26: #{tpu_custom_call.1} parent=1 // pred_check
      _
    $region27: #{tpu_custom_call.1} parent=1 // pred_check_branch
      %254 = sbr.rel (0) target = $region29
    $region28: #{tpu_custom_call.1} parent=1 // pred_region
      %s256 = ssub.s32 512, 512
      %257 = vsyncadd [#allocation4], %s256
      %s258 = sshll.u32 [#allocation5], 4
      %s259 = int_to_ptr.vmem [resolvable:$true] %s258
      %264 = dma.vmem_to_hbm [thread:$0]  %s259, 512, %s5, [#allocation4], 128, 128, 8
    $region29: #{tpu_custom_call.1} parent=1 // pred_fallthru
      _
    // Predicated region
    $region30: #{tpu_custom_call.1} parent=1 // pred_check
      _
    $region31: #{tpu_custom_call.1} parent=1 // pred_check_branch
      %266 = sbr.rel (0) target = $region33
    $region32: #{tpu_custom_call.1} parent=1 // pred_region
      %267 = dma.done [#allocation4], 512
    $region33: #{tpu_custom_call.1} parent=1 // pred_fallthru
      _
    %268 = vsyncpa [#allocation3], 1
    %269 = vsyncpa [#allocation4], 1

</llo_original>
